<compile_context>
chip_gen: v7x
topology: tpu7x:2x2x1
jax: 0.10.0
libtpu: 0.0.40
codegen_flags: <defaults>
</compile_context>

<pallas_src>
import functools

import jax
import jax.numpy as jnp
from jax.experimental import pallas as pl
from jax.experimental.pallas import tpu as pltpu

LAYER_SIZES = [3, 3, 3, 3, 3, 1]
USE_SHORTCUT = True

MAX_ROWS = 16          # max sublane rows per batch tile (16*128 = 2048 batch elems)


def _gelu_tanh(x):
    # 0.5 * x * (1 + tanh(sqrt(2/pi) * (x + 0.044715 * x^3)))
    c = jnp.sqrt(jnp.float32(2.0 / jnp.pi))
    return 0.5 * x * (1.0 + jnp.tanh(c * (x + 0.044715 * (x * x * x))))


def _dnn_kernel(x_ref, w_ref, b_ref, o_ref, *, layer_dims, use_shortcut):
    # x_ref: (in0, TR, 128) VMEM   — feature channel k at x_ref[k] (dense vregs)
    # w_ref: (n_weights,) f32 SMEM — layer-major, PyTorch (out,in) row-major
    # b_ref: (n_biases,)  f32 SMEM
    # o_ref: (out_last, TR, 128) VMEM
    xs = [x_ref[k] for k in range(layer_dims[0])]        # list of (TR, 128)
    w_off = 0
    b_off = 0
    for li in range(len(layer_dims) - 1):
        in_f, out_f = layer_dims[li], layer_dims[li + 1]
        ys = []
        for j in range(out_f):
            acc = xs[0] * w_ref[w_off + j * in_f] + b_ref[b_off + j]
            for k in range(1, in_f):
                acc = acc + xs[k] * w_ref[w_off + j * in_f + k]
            g = _gelu_tanh(acc)
            if use_shortcut and in_f == out_f:            # residual add
                g = g + xs[j]
            ys.append(g)
        xs = ys
        w_off += in_f * out_f
        b_off += out_f
    for j in range(layer_dims[-1]):
        o_ref[j] = xs[j]


def pack_params(weights, biases, use_shortcut):
    """One-time parameter packing (NOT in the per-forward path).

    weights[i]: (out_i, in_i) PyTorch layout, flattened row-major so that
    w_flat[off + j*in_i + k] = W_i[j, k]. biases concatenated likewise."""
    w_flat = jnp.concatenate(
        [jnp.asarray(w, jnp.float32).reshape(-1) for w in weights])
    b_flat = jnp.concatenate(
        [jnp.asarray(b, jnp.float32).reshape(-1) for b in biases])
    layer_dims = (int(weights[0].shape[1]),) + tuple(
        int(w.shape[0]) for w in weights)
    meta = (layer_dims, bool(use_shortcut))
    return w_flat, b_flat, meta


@functools.partial(jax.jit, static_argnames=("meta",))
def dnn_forward(x, w_flat, b_flat, meta):
    """x: (B, layer_dims[0]) float. Returns (B, layer_dims[-1]) float32."""
    layer_dims, use_shortcut = meta
    B, in_f = x.shape
    assert in_f == layer_dims[0], (in_f, layer_dims)
    out_f = layer_dims[-1]

    # Batch tiling: batch -> (rows, 128) with up to MAX_ROWS sublane rows per
    # grid step (2048 batch elems).  Small batches use a single grid step.
    n128 = pl.cdiv(B, 128)                    # number of 128-lane batch groups
    tr = n128 if n128 <= MAX_ROWS else MAX_ROWS
    ngrid = pl.cdiv(n128, tr)
    b_total = ngrid * tr * 128

    # Tiny layout plumbing: (B, in_f) -> (in_f, b_total) -> (in_f, rows, 128).
    x_t = jnp.asarray(x, jnp.float32).T                  # (in_f, B)
    if b_total != B:
        x_t = jnp.pad(x_t, ((0, 0), (0, b_total - B)))
    x_t = x_t.reshape(in_f, ngrid * tr, 128)

    kernel = functools.partial(
        _dnn_kernel, layer_dims=layer_dims, use_shortcut=use_shortcut)

    out_t = pl.pallas_call(
        kernel,
        out_shape=jax.ShapeDtypeStruct((out_f, ngrid * tr, 128), jnp.float32),
        grid=(ngrid,),
        in_specs=[
            pl.BlockSpec((in_f, tr, 128), lambda i: (0, i, 0)),     # batch tile
            pl.BlockSpec(memory_space=pltpu.MemorySpace.SMEM),      # weights
            pl.BlockSpec(memory_space=pltpu.MemorySpace.SMEM),      # biases
        ],
        out_specs=pl.BlockSpec((out_f, tr, 128), lambda i: (0, i, 0)),
        compiler_params=pltpu.CompilerParams(
            dimension_semantics=("parallel",)),
    )(x_t, w_flat, b_flat)

    out = out_t.reshape(out_f, b_total)[:, :B].T         # (B, out_f), tiny
    return out


def _reference(x, weights, biases, use_shortcut):
    # Pure-JAX reference (mirrors the PyTorch forward).
    x = jnp.asarray(x, jnp.float32)
    for w, b in zip(weights, biases):
        y = _gelu_tanh(x @ w.T + b)
        if use_shortcut and x.shape == y.shape:
            x = x + y
        else:
            x = y
    return x


if __name__ == "__main__":
    key = jax.random.PRNGKey(0)

    # Deterministic parameter init (PyTorch nn.Linear-style uniform bounds).
    weights, biases = [], []
    for i in range(len(LAYER_SIZES) - 1):
        in_f, out_f = LAYER_SIZES[i], LAYER_SIZES[i + 1]
        key, kw, kb = jax.random.split(key, 3)
        bound = 1.0 / jnp.sqrt(jnp.float32(in_f))
        weights.append(
            jax.random.uniform(kw, (out_f, in_f), jnp.float32, -bound, bound))
        biases.append(
            jax.random.uniform(kb, (out_f,), jnp.float32, -bound, bound))

    # Pack/pad parameters ONCE (model "init"), then run the jitted forward.
    w_flat, b_flat, meta = pack_params(weights, biases, USE_SHORTCUT)

    # Small example matching the module: batch=2, in_features=3.
    key, kx = jax.random.split(key)
    x_small = jax.random.uniform(kx, (2, LAYER_SIZES[0]), jnp.float32)
    out_small = jax.block_until_ready(dnn_forward(x_small, w_flat, b_flat, meta))
    ref_small = _reference(x_small, weights, biases, USE_SHORTCUT)
    assert out_small.shape == (2, LAYER_SIZES[-1]), out_small.shape
    assert jnp.allclose(out_small, ref_small, atol=1e-5, rtol=1e-5), (
        out_small, ref_small)

    # Larger ragged batch: exercises multi-step grid + lane padding path.
    key, kx2 = jax.random.split(key)
    x_big = jax.random.uniform(kx2, (2177, LAYER_SIZES[0]), jnp.float32)
    out_big = jax.block_until_ready(dnn_forward(x_big, w_flat, b_flat, meta))
    ref_big = _reference(x_big, weights, biases, USE_SHORTCUT)
    assert out_big.shape == (2177, LAYER_SIZES[-1]), out_big.shape
    assert jnp.allclose(out_big, ref_big, atol=1e-5, rtol=1e-5)

    print("KERNEL_OK")
</pallas_src>

<mosaic_0001>
module attributes {stable_mosaic.version = 11 : i64} {
  func.func @_dnn_kernel(%arg0: i32, %arg1: memref<3x1x128xf32, #tpu.memory_space<vmem>>, %arg2: memref<39xf32, #tpu.memory_space<smem>>, %arg3: memref<13xf32, #tpu.memory_space<smem>>, %arg4: memref<1x1x128xf32, #tpu.memory_space<vmem>>) attributes {dimension_semantics = [#tpu.dimension_semantics<parallel>], iteration_bounds = array<i64: 1>, scalar_prefetch = 0 : i64, scratch_operands = 0 : i64, tpu.core_type = #tpu.core_type<tc>, window_params = [{transform_indices = @transform_0, window_bounds = array<i64: 3, 1, 128>}, {transform_indices = @transform_1, window_bounds = array<i64: 39>}, {transform_indices = @transform_2, window_bounds = array<i64: 13>}, {transform_indices = @transform_3, window_bounds = array<i64: 1, 1, 128>}]} {
    %c0 = arith.constant 0 : index
    %c0_0 = arith.constant 0 : index
    %c0_1 = arith.constant 0 : index
    %0 = vector.load %arg1[%c0, %c0_0, %c0_1] : memref<3x1x128xf32, #tpu.memory_space<vmem>>, vector<1x1x128xf32>
    %1 = vector.shape_cast %0 : vector<1x1x128xf32> to vector<1x128xf32>
    %c1 = arith.constant 1 : index
    %c0_2 = arith.constant 0 : index
    %c0_3 = arith.constant 0 : index
    %2 = vector.load %arg1[%c1, %c0_2, %c0_3] : memref<3x1x128xf32, #tpu.memory_space<vmem>>, vector<1x1x128xf32>
    %3 = vector.shape_cast %2 : vector<1x1x128xf32> to vector<1x128xf32>
    %c2 = arith.constant 2 : index
    %c0_4 = arith.constant 0 : index
    %c0_5 = arith.constant 0 : index
    %4 = vector.load %arg1[%c2, %c0_4, %c0_5] : memref<3x1x128xf32, #tpu.memory_space<vmem>>, vector<1x1x128xf32>
    %5 = vector.shape_cast %4 : vector<1x1x128xf32> to vector<1x128xf32>
    %c0_6 = arith.constant 0 : index
    %6 = memref.load %arg2[%c0_6] : memref<39xf32, #tpu.memory_space<smem>>
    %7 = vector.broadcast %6 : f32 to vector<1x128xf32>
    %8 = arith.mulf %1, %7 : vector<1x128xf32>
    %c0_7 = arith.constant 0 : index
    %9 = memref.load %arg3[%c0_7] : memref<13xf32, #tpu.memory_space<smem>>
    %10 = vector.broadcast %9 : f32 to vector<1x128xf32>
    %11 = arith.addf %8, %10 : vector<1x128xf32>
    %c1_8 = arith.constant 1 : index
    %12 = memref.load %arg2[%c1_8] : memref<39xf32, #tpu.memory_space<smem>>
    %13 = vector.broadcast %12 : f32 to vector<1x128xf32>
    %14 = arith.mulf %3, %13 : vector<1x128xf32>
    %15 = arith.addf %11, %14 : vector<1x128xf32>
    %c2_9 = arith.constant 2 : index
    %16 = memref.load %arg2[%c2_9] : memref<39xf32, #tpu.memory_space<smem>>
    %17 = vector.broadcast %16 : f32 to vector<1x128xf32>
    %18 = arith.mulf %5, %17 : vector<1x128xf32>
    %19 = arith.addf %15, %18 : vector<1x128xf32>
    %cst = arith.constant 0.636619746 : f32
    %20 = math.sqrt %cst : f32
    %cst_10 = arith.constant 5.000000e-01 : f32
    %21 = vector.broadcast %cst_10 : f32 to vector<1x128xf32>
    %22 = arith.mulf %21, %19 : vector<1x128xf32>
    %23 = arith.mulf %19, %19 : vector<1x128xf32>
    %24 = arith.mulf %23, %19 : vector<1x128xf32>
    %cst_11 = arith.constant 4.471500e-02 : f32
    %25 = vector.broadcast %cst_11 : f32 to vector<1x128xf32>
    %26 = arith.mulf %25, %24 : vector<1x128xf32>
    %27 = arith.addf %19, %26 : vector<1x128xf32>
    %28 = vector.broadcast %20 : f32 to vector<1x128xf32>
    %29 = arith.mulf %28, %27 : vector<1x128xf32>
    %30 = math.tanh %29 : vector<1x128xf32>
    %cst_12 = arith.constant 1.000000e+00 : f32
    %31 = vector.broadcast %cst_12 : f32 to vector<1x128xf32>
    %32 = arith.addf %31, %30 : vector<1x128xf32>
    %33 = arith.mulf %22, %32 : vector<1x128xf32>
    %34 = arith.addf %33, %1 : vector<1x128xf32>
    %c3 = arith.constant 3 : index
    %35 = memref.load %arg2[%c3] : memref<39xf32, #tpu.memory_space<smem>>
    %36 = vector.broadcast %35 : f32 to vector<1x128xf32>
    %37 = arith.mulf %1, %36 : vector<1x128xf32>
    %c1_13 = arith.constant 1 : index
    %38 = memref.load %arg3[%c1_13] : memref<13xf32, #tpu.memory_space<smem>>
    %39 = vector.broadcast %38 : f32 to vector<1x128xf32>
    %40 = arith.addf %37, %39 : vector<1x128xf32>
    %c4 = arith.constant 4 : index
    %41 = memref.load %arg2[%c4] : memref<39xf32, #tpu.memory_space<smem>>
    %42 = vector.broadcast %41 : f32 to vector<1x128xf32>
    %43 = arith.mulf %3, %42 : vector<1x128xf32>
    %44 = arith.addf %40, %43 : vector<1x128xf32>
    %c5 = arith.constant 5 : index
    %45 = memref.load %arg2[%c5] : memref<39xf32, #tpu.memory_space<smem>>
    %46 = vector.broadcast %45 : f32 to vector<1x128xf32>
    %47 = arith.mulf %5, %46 : vector<1x128xf32>
    %48 = arith.addf %44, %47 : vector<1x128xf32>
    %cst_14 = arith.constant 0.636619746 : f32
    %49 = math.sqrt %cst_14 : f32
    %cst_15 = arith.constant 5.000000e-01 : f32
    %50 = vector.broadcast %cst_15 : f32 to vector<1x128xf32>
    %51 = arith.mulf %50, %48 : vector<1x128xf32>
    %52 = arith.mulf %48, %48 : vector<1x128xf32>
    %53 = arith.mulf %52, %48 : vector<1x128xf32>
    %cst_16 = arith.constant 4.471500e-02 : f32
    %54 = vector.broadcast %cst_16 : f32 to vector<1x128xf32>
    %55 = arith.mulf %54, %53 : vector<1x128xf32>
    %56 = arith.addf %48, %55 : vector<1x128xf32>
    %57 = vector.broadcast %49 : f32 to vector<1x128xf32>
    %58 = arith.mulf %57, %56 : vector<1x128xf32>
    %59 = math.tanh %58 : vector<1x128xf32>
    %cst_17 = arith.constant 1.000000e+00 : f32
    %60 = vector.broadcast %cst_17 : f32 to vector<1x128xf32>
    %61 = arith.addf %60, %59 : vector<1x128xf32>
    %62 = arith.mulf %51, %61 : vector<1x128xf32>
    %63 = arith.addf %62, %3 : vector<1x128xf32>
    %c6 = arith.constant 6 : index
    %64 = memref.load %arg2[%c6] : memref<39xf32, #tpu.memory_space<smem>>
    %65 = vector.broadcast %64 : f32 to vector<1x128xf32>
    %66 = arith.mulf %1, %65 : vector<1x128xf32>
    %c2_18 = arith.constant 2 : index
    %67 = memref.load %arg3[%c2_18] : memref<13xf32, #tpu.memory_space<smem>>
    %68 = vector.broadcast %67 : f32 to vector<1x128xf32>
    %69 = arith.addf %66, %68 : vector<1x128xf32>
    %c7 = arith.constant 7 : index
    %70 = memref.load %arg2[%c7] : memref<39xf32, #tpu.memory_space<smem>>
    %71 = vector.broadcast %70 : f32 to vector<1x128xf32>
    %72 = arith.mulf %3, %71 : vector<1x128xf32>
    %73 = arith.addf %69, %72 : vector<1x128xf32>
    %c8 = arith.constant 8 : index
    %74 = memref.load %arg2[%c8] : memref<39xf32, #tpu.memory_space<smem>>
    %75 = vector.broadcast %74 : f32 to vector<1x128xf32>
    %76 = arith.mulf %5, %75 : vector<1x128xf32>
    %77 = arith.addf %73, %76 : vector<1x128xf32>
    %cst_19 = arith.constant 0.636619746 : f32
    %78 = math.sqrt %cst_19 : f32
    %cst_20 = arith.constant 5.000000e-01 : f32
    %79 = vector.broadcast %cst_20 : f32 to vector<1x128xf32>
    %80 = arith.mulf %79, %77 : vector<1x128xf32>
    %81 = arith.mulf %77, %77 : vector<1x128xf32>
    %82 = arith.mulf %81, %77 : vector<1x128xf32>
    %cst_21 = arith.constant 4.471500e-02 : f32
    %83 = vector.broadcast %cst_21 : f32 to vector<1x128xf32>
    %84 = arith.mulf %83, %82 : vector<1x128xf32>
    %85 = arith.addf %77, %84 : vector<1x128xf32>
    %86 = vector.broadcast %78 : f32 to vector<1x128xf32>
    %87 = arith.mulf %86, %85 : vector<1x128xf32>
    %88 = math.tanh %87 : vector<1x128xf32>
    %cst_22 = arith.constant 1.000000e+00 : f32
    %89 = vector.broadcast %cst_22 : f32 to vector<1x128xf32>
    %90 = arith.addf %89, %88 : vector<1x128xf32>
    %91 = arith.mulf %80, %90 : vector<1x128xf32>
    %92 = arith.addf %91, %5 : vector<1x128xf32>
    %c9 = arith.constant 9 : index
    %93 = memref.load %arg2[%c9] : memref<39xf32, #tpu.memory_space<smem>>
    %94 = vector.broadcast %93 : f32 to vector<1x128xf32>
    %95 = arith.mulf %34, %94 : vector<1x128xf32>
    %c3_23 = arith.constant 3 : index
    %96 = memref.load %arg3[%c3_23] : memref<13xf32, #tpu.memory_space<smem>>
    %97 = vector.broadcast %96 : f32 to vector<1x128xf32>
    %98 = arith.addf %95, %97 : vector<1x128xf32>
    %c10 = arith.constant 10 : index
    %99 = memref.load %arg2[%c10] : memref<39xf32, #tpu.memory_space<smem>>
    %100 = vector.broadcast %99 : f32 to vector<1x128xf32>
    %101 = arith.mulf %63, %100 : vector<1x128xf32>
    %102 = arith.addf %98, %101 : vector<1x128xf32>
    %c11 = arith.constant 11 : index
    %103 = memref.load %arg2[%c11] : memref<39xf32, #tpu.memory_space<smem>>
    %104 = vector.broadcast %103 : f32 to vector<1x128xf32>
    %105 = arith.mulf %92, %104 : vector<1x128xf32>
    %106 = arith.addf %102, %105 : vector<1x128xf32>
    %cst_24 = arith.constant 0.636619746 : f32
    %107 = math.sqrt %cst_24 : f32
    %cst_25 = arith.constant 5.000000e-01 : f32
    %108 = vector.broadcast %cst_25 : f32 to vector<1x128xf32>
    %109 = arith.mulf %108, %106 : vector<1x128xf32>
    %110 = arith.mulf %106, %106 : vector<1x128xf32>
    %111 = arith.mulf %110, %106 : vector<1x128xf32>
    %cst_26 = arith.constant 4.471500e-02 : f32
    %112 = vector.broadcast %cst_26 : f32 to vector<1x128xf32>
    %113 = arith.mulf %112, %111 : vector<1x128xf32>
    %114 = arith.addf %106, %113 : vector<1x128xf32>
    %115 = vector.broadcast %107 : f32 to vector<1x128xf32>
    %116 = arith.mulf %115, %114 : vector<1x128xf32>
    %117 = math.tanh %116 : vector<1x128xf32>
    %cst_27 = arith.constant 1.000000e+00 : f32
    %118 = vector.broadcast %cst_27 : f32 to vector<1x128xf32>
    %119 = arith.addf %118, %117 : vector<1x128xf32>
    %120 = arith.mulf %109, %119 : vector<1x128xf32>
    %121 = arith.addf %120, %34 : vector<1x128xf32>
    %c12 = arith.constant 12 : index
    %122 = memref.load %arg2[%c12] : memref<39xf32, #tpu.memory_space<smem>>
    %123 = vector.broadcast %122 : f32 to vector<1x128xf32>
    %124 = arith.mulf %34, %123 : vector<1x128xf32>
    %c4_28 = arith.constant 4 : index
    %125 = memref.load %arg3[%c4_28] : memref<13xf32, #tpu.memory_space<smem>>
    %126 = vector.broadcast %125 : f32 to vector<1x128xf32>
    %127 = arith.addf %124, %126 : vector<1x128xf32>
    %c13 = arith.constant 13 : index
    %128 = memref.load %arg2[%c13] : memref<39xf32, #tpu.memory_space<smem>>
    %129 = vector.broadcast %128 : f32 to vector<1x128xf32>
    %130 = arith.mulf %63, %129 : vector<1x128xf32>
    %131 = arith.addf %127, %130 : vector<1x128xf32>
    %c14 = arith.constant 14 : index
    %132 = memref.load %arg2[%c14] : memref<39xf32, #tpu.memory_space<smem>>
    %133 = vector.broadcast %132 : f32 to vector<1x128xf32>
    %134 = arith.mulf %92, %133 : vector<1x128xf32>
    %135 = arith.addf %131, %134 : vector<1x128xf32>
    %cst_29 = arith.constant 0.636619746 : f32
    %136 = math.sqrt %cst_29 : f32
    %cst_30 = arith.constant 5.000000e-01 : f32
    %137 = vector.broadcast %cst_30 : f32 to vector<1x128xf32>
    %138 = arith.mulf %137, %135 : vector<1x128xf32>
    %139 = arith.mulf %135, %135 : vector<1x128xf32>
    %140 = arith.mulf %139, %135 : vector<1x128xf32>
    %cst_31 = arith.constant 4.471500e-02 : f32
    %141 = vector.broadcast %cst_31 : f32 to vector<1x128xf32>
    %142 = arith.mulf %141, %140 : vector<1x128xf32>
    %143 = arith.addf %135, %142 : vector<1x128xf32>
    %144 = vector.broadcast %136 : f32 to vector<1x128xf32>
    %145 = arith.mulf %144, %143 : vector<1x128xf32>
    %146 = math.tanh %145 : vector<1x128xf32>
    %cst_32 = arith.constant 1.000000e+00 : f32
    %147 = vector.broadcast %cst_32 : f32 to vector<1x128xf32>
    %148 = arith.addf %147, %146 : vector<1x128xf32>
    %149 = arith.mulf %138, %148 : vector<1x128xf32>
    %150 = arith.addf %149, %63 : vector<1x128xf32>
    %c15 = arith.constant 15 : index
    %151 = memref.load %arg2[%c15] : memref<39xf32, #tpu.memory_space<smem>>
    %152 = vector.broadcast %151 : f32 to vector<1x128xf32>
    %153 = arith.mulf %34, %152 : vector<1x128xf32>
    %c5_33 = arith.constant 5 : index
    %154 = memref.load %arg3[%c5_33] : memref<13xf32, #tpu.memory_space<smem>>
    %155 = vector.broadcast %154 : f32 to vector<1x128xf32>
    %156 = arith.addf %153, %155 : vector<1x128xf32>
    %c16 = arith.constant 16 : index
    %157 = memref.load %arg2[%c16] : memref<39xf32, #tpu.memory_space<smem>>
    %158 = vector.broadcast %157 : f32 to vector<1x128xf32>
    %159 = arith.mulf %63, %158 : vector<1x128xf32>
    %160 = arith.addf %156, %159 : vector<1x128xf32>
    %c17 = arith.constant 17 : index
    %161 = memref.load %arg2[%c17] : memref<39xf32, #tpu.memory_space<smem>>
    %162 = vector.broadcast %161 : f32 to vector<1x128xf32>
    %163 = arith.mulf %92, %162 : vector<1x128xf32>
    %164 = arith.addf %160, %163 : vector<1x128xf32>
    %cst_34 = arith.constant 0.636619746 : f32
    %165 = math.sqrt %cst_34 : f32
    %cst_35 = arith.constant 5.000000e-01 : f32
    %166 = vector.broadcast %cst_35 : f32 to vector<1x128xf32>
    %167 = arith.mulf %166, %164 : vector<1x128xf32>
    %168 = arith.mulf %164, %164 : vector<1x128xf32>
    %169 = arith.mulf %168, %164 : vector<1x128xf32>
    %cst_36 = arith.constant 4.471500e-02 : f32
    %170 = vector.broadcast %cst_36 : f32 to vector<1x128xf32>
    %171 = arith.mulf %170, %169 : vector<1x128xf32>
    %172 = arith.addf %164, %171 : vector<1x128xf32>
    %173 = vector.broadcast %165 : f32 to vector<1x128xf32>
    %174 = arith.mulf %173, %172 : vector<1x128xf32>
    %175 = math.tanh %174 : vector<1x128xf32>
    %cst_37 = arith.constant 1.000000e+00 : f32
    %176 = vector.broadcast %cst_37 : f32 to vector<1x128xf32>
    %177 = arith.addf %176, %175 : vector<1x128xf32>
    %178 = arith.mulf %167, %177 : vector<1x128xf32>
    %179 = arith.addf %178, %92 : vector<1x128xf32>
    %c18 = arith.constant 18 : index
    %180 = memref.load %arg2[%c18] : memref<39xf32, #tpu.memory_space<smem>>
    %181 = vector.broadcast %180 : f32 to vector<1x128xf32>
    %182 = arith.mulf %121, %181 : vector<1x128xf32>
    %c6_38 = arith.constant 6 : index
    %183 = memref.load %arg3[%c6_38] : memref<13xf32, #tpu.memory_space<smem>>
    %184 = vector.broadcast %183 : f32 to vector<1x128xf32>
    %185 = arith.addf %182, %184 : vector<1x128xf32>
    %c19 = arith.constant 19 : index
    %186 = memref.load %arg2[%c19] : memref<39xf32, #tpu.memory_space<smem>>
    %187 = vector.broadcast %186 : f32 to vector<1x128xf32>
    %188 = arith.mulf %150, %187 : vector<1x128xf32>
    %189 = arith.addf %185, %188 : vector<1x128xf32>
    %c20 = arith.constant 20 : index
    %190 = memref.load %arg2[%c20] : memref<39xf32, #tpu.memory_space<smem>>
    %191 = vector.broadcast %190 : f32 to vector<1x128xf32>
    %192 = arith.mulf %179, %191 : vector<1x128xf32>
    %193 = arith.addf %189, %192 : vector<1x128xf32>
    %cst_39 = arith.constant 0.636619746 : f32
    %194 = math.sqrt %cst_39 : f32
    %cst_40 = arith.constant 5.000000e-01 : f32
    %195 = vector.broadcast %cst_40 : f32 to vector<1x128xf32>
    %196 = arith.mulf %195, %193 : vector<1x128xf32>
    %197 = arith.mulf %193, %193 : vector<1x128xf32>
    %198 = arith.mulf %197, %193 : vector<1x128xf32>
    %cst_41 = arith.constant 4.471500e-02 : f32
    %199 = vector.broadcast %cst_41 : f32 to vector<1x128xf32>
    %200 = arith.mulf %199, %198 : vector<1x128xf32>
    %201 = arith.addf %193, %200 : vector<1x128xf32>
    %202 = vector.broadcast %194 : f32 to vector<1x128xf32>
    %203 = arith.mulf %202, %201 : vector<1x128xf32>
    %204 = math.tanh %203 : vector<1x128xf32>
    %cst_42 = arith.constant 1.000000e+00 : f32
    %205 = vector.broadcast %cst_42 : f32 to vector<1x128xf32>
    %206 = arith.addf %205, %204 : vector<1x128xf32>
    %207 = arith.mulf %196, %206 : vector<1x128xf32>
    %208 = arith.addf %207, %121 : vector<1x128xf32>
    %c21 = arith.constant 21 : index
    %209 = memref.load %arg2[%c21] : memref<39xf32, #tpu.memory_space<smem>>
    %210 = vector.broadcast %209 : f32 to vector<1x128xf32>
    %211 = arith.mulf %121, %210 : vector<1x128xf32>
    %c7_43 = arith.constant 7 : index
    %212 = memref.load %arg3[%c7_43] : memref<13xf32, #tpu.memory_space<smem>>
    %213 = vector.broadcast %212 : f32 to vector<1x128xf32>
    %214 = arith.addf %211, %213 : vector<1x128xf32>
    %c22 = arith.constant 22 : index
    %215 = memref.load %arg2[%c22] : memref<39xf32, #tpu.memory_space<smem>>
    %216 = vector.broadcast %215 : f32 to vector<1x128xf32>
    %217 = arith.mulf %150, %216 : vector<1x128xf32>
    %218 = arith.addf %214, %217 : vector<1x128xf32>
    %c23 = arith.constant 23 : index
    %219 = memref.load %arg2[%c23] : memref<39xf32, #tpu.memory_space<smem>>
    %220 = vector.broadcast %219 : f32 to vector<1x128xf32>
    %221 = arith.mulf %179, %220 : vector<1x128xf32>
    %222 = arith.addf %218, %221 : vector<1x128xf32>
    %cst_44 = arith.constant 0.636619746 : f32
    %223 = math.sqrt %cst_44 : f32
    %cst_45 = arith.constant 5.000000e-01 : f32
    %224 = vector.broadcast %cst_45 : f32 to vector<1x128xf32>
    %225 = arith.mulf %224, %222 : vector<1x128xf32>
    %226 = arith.mulf %222, %222 : vector<1x128xf32>
    %227 = arith.mulf %226, %222 : vector<1x128xf32>
    %cst_46 = arith.constant 4.471500e-02 : f32
    %228 = vector.broadcast %cst_46 : f32 to vector<1x128xf32>
    %229 = arith.mulf %228, %227 : vector<1x128xf32>
    %230 = arith.addf %222, %229 : vector<1x128xf32>
    %231 = vector.broadcast %223 : f32 to vector<1x128xf32>
    %232 = arith.mulf %231, %230 : vector<1x128xf32>
    %233 = math.tanh %232 : vector<1x128xf32>
    %cst_47 = arith.constant 1.000000e+00 : f32
    %234 = vector.broadcast %cst_47 : f32 to vector<1x128xf32>
    %235 = arith.addf %234, %233 : vector<1x128xf32>
    %236 = arith.mulf %225, %235 : vector<1x128xf32>
    %237 = arith.addf %236, %150 : vector<1x128xf32>
    %c24 = arith.constant 24 : index
    %238 = memref.load %arg2[%c24] : memref<39xf32, #tpu.memory_space<smem>>
    %239 = vector.broadcast %238 : f32 to vector<1x128xf32>
    %240 = arith.mulf %121, %239 : vector<1x128xf32>
    %c8_48 = arith.constant 8 : index
    %241 = memref.load %arg3[%c8_48] : memref<13xf32, #tpu.memory_space<smem>>
    %242 = vector.broadcast %241 : f32 to vector<1x128xf32>
    %243 = arith.addf %240, %242 : vector<1x128xf32>
    %c25 = arith.constant 25 : index
    %244 = memref.load %arg2[%c25] : memref<39xf32, #tpu.memory_space<smem>>
    %245 = vector.broadcast %244 : f32 to vector<1x128xf32>
    %246 = arith.mulf %150, %245 : vector<1x128xf32>
    %247 = arith.addf %243, %246 : vector<1x128xf32>
    %c26 = arith.constant 26 : index
    %248 = memref.load %arg2[%c26] : memref<39xf32, #tpu.memory_space<smem>>
    %249 = vector.broadcast %248 : f32 to vector<1x128xf32>
    %250 = arith.mulf %179, %249 : vector<1x128xf32>
    %251 = arith.addf %247, %250 : vector<1x128xf32>
    %cst_49 = arith.constant 0.636619746 : f32
    %252 = math.sqrt %cst_49 : f32
    %cst_50 = arith.constant 5.000000e-01 : f32
    %253 = vector.broadcast %cst_50 : f32 to vector<1x128xf32>
    %254 = arith.mulf %253, %251 : vector<1x128xf32>
    %255 = arith.mulf %251, %251 : vector<1x128xf32>
    %256 = arith.mulf %255, %251 : vector<1x128xf32>
    %cst_51 = arith.constant 4.471500e-02 : f32
    %257 = vector.broadcast %cst_51 : f32 to vector<1x128xf32>
    %258 = arith.mulf %257, %256 : vector<1x128xf32>
    %259 = arith.addf %251, %258 : vector<1x128xf32>
    %260 = vector.broadcast %252 : f32 to vector<1x128xf32>
    %261 = arith.mulf %260, %259 : vector<1x128xf32>
    %262 = math.tanh %261 : vector<1x128xf32>
    %cst_52 = arith.constant 1.000000e+00 : f32
    %263 = vector.broadcast %cst_52 : f32 to vector<1x128xf32>
    %264 = arith.addf %263, %262 : vector<1x128xf32>
    %265 = arith.mulf %254, %264 : vector<1x128xf32>
    %266 = arith.addf %265, %179 : vector<1x128xf32>
    %c27 = arith.constant 27 : index
    %267 = memref.load %arg2[%c27] : memref<39xf32, #tpu.memory_space<smem>>
    %268 = vector.broadcast %267 : f32 to vector<1x128xf32>
    %269 = arith.mulf %208, %268 : vector<1x128xf32>
    %c9_53 = arith.constant 9 : index
    %270 = memref.load %arg3[%c9_53] : memref<13xf32, #tpu.memory_space<smem>>
    %271 = vector.broadcast %270 : f32 to vector<1x128xf32>
    %272 = arith.addf %269, %271 : vector<1x128xf32>
    %c28 = arith.constant 28 : index
    %273 = memref.load %arg2[%c28] : memref<39xf32, #tpu.memory_space<smem>>
    %274 = vector.broadcast %273 : f32 to vector<1x128xf32>
    %275 = arith.mulf %237, %274 : vector<1x128xf32>
    %276 = arith.addf %272, %275 : vector<1x128xf32>
    %c29 = arith.constant 29 : index
    %277 = memref.load %arg2[%c29] : memref<39xf32, #tpu.memory_space<smem>>
    %278 = vector.broadcast %277 : f32 to vector<1x128xf32>
    %279 = arith.mulf %266, %278 : vector<1x128xf32>
    %280 = arith.addf %276, %279 : vector<1x128xf32>
    %cst_54 = arith.constant 0.636619746 : f32
    %281 = math.sqrt %cst_54 : f32
    %cst_55 = arith.constant 5.000000e-01 : f32
    %282 = vector.broadcast %cst_55 : f32 to vector<1x128xf32>
    %283 = arith.mulf %282, %280 : vector<1x128xf32>
    %284 = arith.mulf %280, %280 : vector<1x128xf32>
    %285 = arith.mulf %284, %280 : vector<1x128xf32>
    %cst_56 = arith.constant 4.471500e-02 : f32
    %286 = vector.broadcast %cst_56 : f32 to vector<1x128xf32>
    %287 = arith.mulf %286, %285 : vector<1x128xf32>
    %288 = arith.addf %280, %287 : vector<1x128xf32>
    %289 = vector.broadcast %281 : f32 to vector<1x128xf32>
    %290 = arith.mulf %289, %288 : vector<1x128xf32>
    %291 = math.tanh %290 : vector<1x128xf32>
    %cst_57 = arith.constant 1.000000e+00 : f32
    %292 = vector.broadcast %cst_57 : f32 to vector<1x128xf32>
    %293 = arith.addf %292, %291 : vector<1x128xf32>
    %294 = arith.mulf %283, %293 : vector<1x128xf32>
    %295 = arith.addf %294, %208 : vector<1x128xf32>
    %c30 = arith.constant 30 : index
    %296 = memref.load %arg2[%c30] : memref<39xf32, #tpu.memory_space<smem>>
    %297 = vector.broadcast %296 : f32 to vector<1x128xf32>
    %298 = arith.mulf %208, %297 : vector<1x128xf32>
    %c10_58 = arith.constant 10 : index
    %299 = memref.load %arg3[%c10_58] : memref<13xf32, #tpu.memory_space<smem>>
    %300 = vector.broadcast %299 : f32 to vector<1x128xf32>
    %301 = arith.addf %298, %300 : vector<1x128xf32>
    %c31 = arith.constant 31 : index
    %302 = memref.load %arg2[%c31] : memref<39xf32, #tpu.memory_space<smem>>
    %303 = vector.broadcast %302 : f32 to vector<1x128xf32>
    %304 = arith.mulf %237, %303 : vector<1x128xf32>
    %305 = arith.addf %301, %304 : vector<1x128xf32>
    %c32 = arith.constant 32 : index
    %306 = memref.load %arg2[%c32] : memref<39xf32, #tpu.memory_space<smem>>
    %307 = vector.broadcast %306 : f32 to vector<1x128xf32>
    %308 = arith.mulf %266, %307 : vector<1x128xf32>
    %309 = arith.addf %305, %308 : vector<1x128xf32>
    %cst_59 = arith.constant 0.636619746 : f32
    %310 = math.sqrt %cst_59 : f32
    %cst_60 = arith.constant 5.000000e-01 : f32
    %311 = vector.broadcast %cst_60 : f32 to vector<1x128xf32>
    %312 = arith.mulf %311, %309 : vector<1x128xf32>
    %313 = arith.mulf %309, %309 : vector<1x128xf32>
    %314 = arith.mulf %313, %309 : vector<1x128xf32>
    %cst_61 = arith.constant 4.471500e-02 : f32
    %315 = vector.broadcast %cst_61 : f32 to vector<1x128xf32>
    %316 = arith.mulf %315, %314 : vector<1x128xf32>
    %317 = arith.addf %309, %316 : vector<1x128xf32>
    %318 = vector.broadcast %310 : f32 to vector<1x128xf32>
    %319 = arith.mulf %318, %317 : vector<1x128xf32>
    %320 = math.tanh %319 : vector<1x128xf32>
    %cst_62 = arith.constant 1.000000e+00 : f32
    %321 = vector.broadcast %cst_62 : f32 to vector<1x128xf32>
    %322 = arith.addf %321, %320 : vector<1x128xf32>
    %323 = arith.mulf %312, %322 : vector<1x128xf32>
    %324 = arith.addf %323, %237 : vector<1x128xf32>
    %c33 = arith.constant 33 : index
    %325 = memref.load %arg2[%c33] : memref<39xf32, #tpu.memory_space<smem>>
    %326 = vector.broadcast %325 : f32 to vector<1x128xf32>
    %327 = arith.mulf %208, %326 : vector<1x128xf32>
    %c11_63 = arith.constant 11 : index
    %328 = memref.load %arg3[%c11_63] : memref<13xf32, #tpu.memory_space<smem>>
    %329 = vector.broadcast %328 : f32 to vector<1x128xf32>
    %330 = arith.addf %327, %329 : vector<1x128xf32>
    %c34 = arith.constant 34 : index
    %331 = memref.load %arg2[%c34] : memref<39xf32, #tpu.memory_space<smem>>
    %332 = vector.broadcast %331 : f32 to vector<1x128xf32>
    %333 = arith.mulf %237, %332 : vector<1x128xf32>
    %334 = arith.addf %330, %333 : vector<1x128xf32>
    %c35 = arith.constant 35 : index
    %335 = memref.load %arg2[%c35] : memref<39xf32, #tpu.memory_space<smem>>
    %336 = vector.broadcast %335 : f32 to vector<1x128xf32>
    %337 = arith.mulf %266, %336 : vector<1x128xf32>
    %338 = arith.addf %334, %337 : vector<1x128xf32>
    %cst_64 = arith.constant 0.636619746 : f32
    %339 = math.sqrt %cst_64 : f32
    %cst_65 = arith.constant 5.000000e-01 : f32
    %340 = vector.broadcast %cst_65 : f32 to vector<1x128xf32>
    %341 = arith.mulf %340, %338 : vector<1x128xf32>
    %342 = arith.mulf %338, %338 : vector<1x128xf32>
    %343 = arith.mulf %342, %338 : vector<1x128xf32>
    %cst_66 = arith.constant 4.471500e-02 : f32
    %344 = vector.broadcast %cst_66 : f32 to vector<1x128xf32>
    %345 = arith.mulf %344, %343 : vector<1x128xf32>
    %346 = arith.addf %338, %345 : vector<1x128xf32>
    %347 = vector.broadcast %339 : f32 to vector<1x128xf32>
    %348 = arith.mulf %347, %346 : vector<1x128xf32>
    %349 = math.tanh %348 : vector<1x128xf32>
    %cst_67 = arith.constant 1.000000e+00 : f32
    %350 = vector.broadcast %cst_67 : f32 to vector<1x128xf32>
    %351 = arith.addf %350, %349 : vector<1x128xf32>
    %352 = arith.mulf %341, %351 : vector<1x128xf32>
    %353 = arith.addf %352, %266 : vector<1x128xf32>
    %c36 = arith.constant 36 : index
    %354 = memref.load %arg2[%c36] : memref<39xf32, #tpu.memory_space<smem>>
    %355 = vector.broadcast %354 : f32 to vector<1x128xf32>
    %356 = arith.mulf %295, %355 : vector<1x128xf32>
    %c12_68 = arith.constant 12 : index
    %357 = memref.load %arg3[%c12_68] : memref<13xf32, #tpu.memory_space<smem>>
    %358 = vector.broadcast %357 : f32 to vector<1x128xf32>
    %359 = arith.addf %356, %358 : vector<1x128xf32>
    %c37 = arith.constant 37 : index
    %360 = memref.load %arg2[%c37] : memref<39xf32, #tpu.memory_space<smem>>
    %361 = vector.broadcast %360 : f32 to vector<1x128xf32>
    %362 = arith.mulf %324, %361 : vector<1x128xf32>
    %363 = arith.addf %359, %362 : vector<1x128xf32>
    %c38 = arith.constant 38 : index
    %364 = memref.load %arg2[%c38] : memref<39xf32, #tpu.memory_space<smem>>
    %365 = vector.broadcast %364 : f32 to vector<1x128xf32>
    %366 = arith.mulf %353, %365 : vector<1x128xf32>
    %367 = arith.addf %363, %366 : vector<1x128xf32>
    %cst_69 = arith.constant 0.636619746 : f32
    %368 = math.sqrt %cst_69 : f32
    %cst_70 = arith.constant 5.000000e-01 : f32
    %369 = vector.broadcast %cst_70 : f32 to vector<1x128xf32>
    %370 = arith.mulf %369, %367 : vector<1x128xf32>
    %371 = arith.mulf %367, %367 : vector<1x128xf32>
    %372 = arith.mulf %371, %367 : vector<1x128xf32>
    %cst_71 = arith.constant 4.471500e-02 : f32
    %373 = vector.broadcast %cst_71 : f32 to vector<1x128xf32>
    %374 = arith.mulf %373, %372 : vector<1x128xf32>
    %375 = arith.addf %367, %374 : vector<1x128xf32>
    %376 = vector.broadcast %368 : f32 to vector<1x128xf32>
    %377 = arith.mulf %376, %375 : vector<1x128xf32>
    %378 = math.tanh %377 : vector<1x128xf32>
    %cst_72 = arith.constant 1.000000e+00 : f32
    %379 = vector.broadcast %cst_72 : f32 to vector<1x128xf32>
    %380 = arith.addf %379, %378 : vector<1x128xf32>
    %381 = arith.mulf %370, %380 : vector<1x128xf32>
    %c0_73 = arith.constant 0 : index
    %c0_74 = arith.constant 0 : index
    %c0_75 = arith.constant 0 : index
    %382 = vector.load %arg4[%c0_73, %c0_74, %c0_75] : memref<1x1x128xf32, #tpu.memory_space<vmem>>, vector<1x1x128xf32>
    %383 = vector.shape_cast %382 : vector<1x1x128xf32> to vector<1x128xf32>
    %384 = vector.shape_cast %381 : vector<1x128xf32> to vector<1x1x128xf32>
    tpu.vector_store %arg4[%c0_73, %c0_74, %c0_75], %384 {strides = array<i32>} : memref<1x1x128xf32, #tpu.memory_space<vmem>>, vector<1x1x128xf32>,
    return
  }
  func.func @transform_0(%arg0: i32) -> (i32, i32, i32) {
    %c0_i32 = arith.constant 0 : i32
    %c0_i32_0 = arith.constant 0 : i32
    %c0_i32_1 = arith.constant 0 : i32
    return %c0_i32, %arg0, %c0_i32_0 : i32, i32, i32
  }
  func.func @transform_1(%arg0: i32) -> i32 {
    %c0_i32 = arith.constant 0 : i32
    %c0_i32_0 = arith.constant 0 : i32
    return %c0_i32 : i32
  }
  func.func @transform_2(%arg0: i32) -> i32 {
    %c0_i32 = arith.constant 0 : i32
    %c0_i32_0 = arith.constant 0 : i32
    return %c0_i32 : i32
  }
  func.func @transform_3(%arg0: i32) -> (i32, i32, i32) {
    %c0_i32 = arith.constant 0 : i32
    %c0_i32_0 = arith.constant 0 : i32
    %c0_i32_1 = arith.constant 0 : i32
    return %c0_i32, %arg0, %c0_i32_0 : i32, i32, i32
  }
}

</mosaic_0001>

<llo_original>
// kernel: dnn_forward.1
$region0: #{dnn_forward.1}
  #allocation0 [shape = 'u32[]', space=smem, size = 0x4, offset = 0x4, fixed_abs, tag = 'smem constant byte address 0x4 - core index']
  #allocation1 [shape = 'u32[144,128]{1,0:T(1,128)}', space=vmem, size = 0x12000, scoped, tag = 'internal scratch']
  %s0 = inlined_call_operand.vmem [shape: f32[3,1,128], index: 0, kind: input, shape index: {}]
  %s1 = inlined_call_operand.vmem [shape: f32[39], index: 1, kind: input, shape index: {}]
  %s2 = inlined_call_operand.vmem [shape: f32[13], index: 2, kind: input, shape index: {}]
  %s3 = inlined_call_operand.vmem [shape: f32[1,1,128], index: 3, kind: output, shape index: {}]
  %s4 = sld [smem:[#allocation0]]
  $region30: #{dnn_forward.1} parent=0
    _
  %s6 = ssub.s32 1, %s4
  %s7 = scalar_select 0, %s6, %s4
  $region1: #{dnn_forward.1} parent=0
    #allocation2 [shape = 'u8[512]{0}', space=smem, size = 0x200, scoped, tag = 'input window, operand 1, single buffered']
    #allocation3 [shape = 's32[1]{0}', space=sflag, size = 0x4, scoped, tag = 'scoped memory for dnn_forward.1']
    #allocation4 [shape = 'u8[512]{0}', space=smem, size = 0x200, scoped, tag = 'input window, operand 2, single buffered']
    #allocation5 [shape = 's32[1]{0}', space=sflag, size = 0x4, scoped, tag = 'scoped memory for dnn_forward.1']
    %8 = vsyncpa [#allocation3], 0
    %9 = vsyncpa [#allocation5], 0
    // Predicated region
    $region2: #{dnn_forward.1} parent=1 // pred_check
      _
    $region3: #{dnn_forward.1} parent=1 // pred_check_branch
      %11 = sbr.rel (0) target = $region5
    $region4: #{dnn_forward.1} parent=1 // pred_region
      _
    $region5: #{dnn_forward.1} parent=1 // pred_fallthru
      _
    // Predicated region
    $region6: #{dnn_forward.1} parent=1 // pred_check
      _
    $region7: #{dnn_forward.1} parent=1 // pred_check_branch
      %13 = sbr.rel (0) target = $region9
    $region8: #{dnn_forward.1} parent=1 // pred_region
      %s15 = ssub.s32 16, 16
      %16 = vsyncadd [#allocation3], %s15
      %s18 = sshll.u32 %s1, 4
      %s19 = int_to_ptr.vmem [resolvable:$true] %s18
      %21 = dma.vmem_to_smem %s19, 16, [#allocation2], [#allocation3]
    $region9: #{dnn_forward.1} parent=1 // pred_fallthru
      _
    // Predicated region
    $region10: #{dnn_forward.1} parent=1 // pred_check
      _
    $region11: #{dnn_forward.1} parent=1 // pred_check_branch
      %23 = sbr.rel (0) target = $region13
    $region12: #{dnn_forward.1} parent=1 // pred_region
      %s25 = ssub.s32 16, 16
      %26 = vsyncadd [#allocation5], %s25
      %s28 = sshll.u32 %s2, 4
      %s29 = int_to_ptr.vmem [resolvable:$true] %s28
      %31 = dma.vmem_to_smem %s29, 16, [#allocation4], [#allocation5]
    $region13: #{dnn_forward.1} parent=1 // pred_fallthru
      _
    // Predicated region
    $region14: #{dnn_forward.1} parent=1 // pred_check
      _
    $region15: #{dnn_forward.1} parent=1 // pred_check_branch
      %33 = sbr.rel (0) target = $region17
    $region16: #{dnn_forward.1} parent=1 // pred_region
      %34 = dma.done [#allocation3], 16
    $region17: #{dnn_forward.1} parent=1 // pred_fallthru
      _
    // Predicated region
    $region18: #{dnn_forward.1} parent=1 // pred_check
      _
    $region19: #{dnn_forward.1} parent=1 // pred_check_branch
      %36 = sbr.rel (0) target = $region21
    $region20: #{dnn_forward.1} parent=1 // pred_region
      %37 = dma.done [#allocation5], 16
    $region21: #{dnn_forward.1} parent=1 // pred_fallthru
      _
    %38 = sfence
    %v39 = vld [vmem:[%s0] sm:$0x1]
    %s40 = scalar_lea.vmem %s0, 1
    %v41 = vld [vmem:[%s40] sm:$0x1]
    %s42 = scalar_lea.vmem %s0, 2
    %v43 = vld [vmem:[%s42] sm:$0x1]
    %s44 = sld [smem:[#allocation2]]
    %v45 = vstv %s44
    %v46 = vmul.f32 %v39, %v45
    %s47 = sld [smem:[#allocation4]]
    %v48 = vstv %s47
    %v49 = vadd.f32 %v46, %v48
    %s50 = sld [smem:[#allocation2 + $0x1]]
    %v51 = vstv %s50
    %v52 = vmul.f32 %v41, %v51
    %v53 = vadd.f32 %v49, %v52
    %s54 = sld [smem:[#allocation2 + $0x2]]
    %v55 = vstv %s54
    %v56 = vmul.f32 %v43, %v55
    %v57 = vadd.f32 %v53, %v56
    %v58 = vmul.f32 %v57, 0.5
    %v59 = vmul.f32 %v57, %v57
    %v60 = vmul.f32 %v59, %v57
    %v61 = vmul.f32 %v60, 0.044715
    %v62 = vadd.f32 %v57, %v61
    %v63 = vmul.f32 %v62, 0.7978845
    %v64 = vtanh.pop %v63
    %v65 = vadd.f32 %v64, 1.0
    %v66 = vmul.f32 %v58, %v65
    %v67 = vadd.f32 %v66, %v39
    %s68 = sld [smem:[#allocation2 + $0x3]]
    %v69 = vstv %s68
    %v70 = vmul.f32 %v39, %v69
    %s71 = sld [smem:[#allocation4 + $0x1]]
    %v72 = vstv %s71
    %v73 = vadd.f32 %v70, %v72
    %s74 = sld [smem:[#allocation2 + $0x4]]
    %v75 = vstv %s74
    %v76 = vmul.f32 %v41, %v75
    %v77 = vadd.f32 %v73, %v76
    %s78 = sld [smem:[#allocation2 + $0x5]]
    %v79 = vstv %s78
    %v80 = vmul.f32 %v43, %v79
    %v81 = vadd.f32 %v77, %v80
    %v82 = vmul.f32 %v81, 0.5
    %v83 = vmul.f32 %v81, %v81
    %v84 = vmul.f32 %v83, %v81
    %v85 = vmul.f32 %v84, 0.044715
    %v86 = vadd.f32 %v81, %v85
    %v87 = vmul.f32 %v86, 0.7978845
    %v88 = vtanh.pop %v87
    %v89 = vadd.f32 %v88, 1.0
    %v90 = vmul.f32 %v82, %v89
    %v91 = vadd.f32 %v90, %v41
    %s92 = sld [smem:[#allocation2 + $0x6]]
    %v93 = vstv %s92
    %v94 = vmul.f32 %v39, %v93
    %s95 = sld [smem:[#allocation4 + $0x2]]
    %v96 = vstv %s95
    %v97 = vadd.f32 %v94, %v96
    %s98 = sld [smem:[#allocation2 + $0x7]]
    %v99 = vstv %s98
    %v100 = vmul.f32 %v41, %v99
    %v101 = vadd.f32 %v97, %v100
    %s102 = sld [smem:[#allocation2 + $0x8]]
    %v103 = vstv %s102
    %v104 = vmul.f32 %v43, %v103
    %v105 = vadd.f32 %v101, %v104
    %v106 = vmul.f32 %v105, 0.5
    %v107 = vmul.f32 %v105, %v105
    %v108 = vmul.f32 %v107, %v105
    %v109 = vmul.f32 %v108, 0.044715
    %v110 = vadd.f32 %v105, %v109
    %v111 = vmul.f32 %v110, 0.7978845
    %v112 = vtanh.pop %v111
    %v113 = vadd.f32 %v112, 1.0
    %v114 = vmul.f32 %v106, %v113
    %v115 = vadd.f32 %v114, %v43
    %s116 = sld [smem:[#allocation2 + $0x9]]
    %v117 = vstv %s116
    %v118 = vmul.f32 %v67, %v117
    %s119 = sld [smem:[#allocation4 + $0x3]]
    %v120 = vstv %s119
    %v121 = vadd.f32 %v118, %v120
    %s122 = sld [smem:[#allocation2 + $0xa]]
    %v123 = vstv %s122
    %v124 = vmul.f32 %v91, %v123
    %v125 = vadd.f32 %v121, %v124
    %s126 = sld [smem:[#allocation2 + $0xb]]
    %v127 = vstv %s126
    %v128 = vmul.f32 %v115, %v127
    %v129 = vadd.f32 %v125, %v128
    %v130 = vmul.f32 %v129, 0.5
    %v131 = vmul.f32 %v129, %v129
    %v132 = vmul.f32 %v131, %v129
    %v133 = vmul.f32 %v132, 0.044715
    %v134 = vadd.f32 %v129, %v133
    %v135 = vmul.f32 %v134, 0.7978845
    %v136 = vtanh.pop %v135
    %v137 = vadd.f32 %v136, 1.0
    %v138 = vmul.f32 %v130, %v137
    %v139 = vadd.f32 %v138, %v67
    %s140 = sld [smem:[#allocation2 + $0xc]]
    %v141 = vstv %s140
    %v142 = vmul.f32 %v67, %v141
    %s143 = sld [smem:[#allocation4 + $0x4]]
    %v144 = vstv %s143
    %v145 = vadd.f32 %v142, %v144
    %s146 = sld [smem:[#allocation2 + $0xd]]
    %v147 = vstv %s146
    %v148 = vmul.f32 %v91, %v147
    %v149 = vadd.f32 %v145, %v148
    %s150 = sld [smem:[#allocation2 + $0xe]]
    %v151 = vstv %s150
    %v152 = vmul.f32 %v115, %v151
    %v153 = vadd.f32 %v149, %v152
    %v154 = vmul.f32 %v153, 0.5
    %v155 = vmul.f32 %v153, %v153
    %v156 = vmul.f32 %v155, %v153
    %v157 = vmul.f32 %v156, 0.044715
    %v158 = vadd.f32 %v153, %v157
    %v159 = vmul.f32 %v158, 0.7978845
    %v160 = vtanh.pop %v159
    %v161 = vadd.f32 %v160, 1.0
    %v162 = vmul.f32 %v154, %v161
    %v163 = vadd.f32 %v162, %v91
    %s164 = sld [smem:[#allocation2 + $0xf]]
    %v165 = vstv %s164
    %v166 = vmul.f32 %v67, %v165
    %s167 = sld [smem:[#allocation4 + $0x5]]
    %v168 = vstv %s167
    %v169 = vadd.f32 %v166, %v168
    %s170 = sld [smem:[#allocation2 + $0x10]]
    %v171 = vstv %s170
    %v172 = vmul.f32 %v91, %v171
    %v173 = vadd.f32 %v169, %v172
    %s174 = sld [smem:[#allocation2 + $0x11]]
    %v175 = vstv %s174
    %v176 = vmul.f32 %v115, %v175
    %v177 = vadd.f32 %v173, %v176
    %v178 = vmul.f32 %v177, 0.5
    %v179 = vmul.f32 %v177, %v177
    %v180 = vmul.f32 %v179, %v177
    %v181 = vmul.f32 %v180, 0.044715
    %v182 = vadd.f32 %v177, %v181
    %v183 = vmul.f32 %v182, 0.7978845
    %v184 = vtanh.pop %v183
    %v185 = vadd.f32 %v184, 1.0
    %v186 = vmul.f32 %v178, %v185
    %v187 = vadd.f32 %v186, %v115
    %s188 = sld [smem:[#allocation2 + $0x12]]
    %v189 = vstv %s188
    %v190 = vmul.f32 %v139, %v189
    %s191 = sld [smem:[#allocation4 + $0x6]]
    %v192 = vstv %s191
    %v193 = vadd.f32 %v190, %v192
    %s194 = sld [smem:[#allocation2 + $0x13]]
    %v195 = vstv %s194
    %v196 = vmul.f32 %v163, %v195
    %v197 = vadd.f32 %v193, %v196
    %s198 = sld [smem:[#allocation2 + $0x14]]
    %v199 = vstv %s198
    %v200 = vmul.f32 %v187, %v199
    %v201 = vadd.f32 %v197, %v200
    %v202 = vmul.f32 %v201, 0.5
    %v203 = vmul.f32 %v201, %v201
    %v204 = vmul.f32 %v203, %v201
    %v205 = vmul.f32 %v204, 0.044715
    %v206 = vadd.f32 %v201, %v205
    %v207 = vmul.f32 %v206, 0.7978845
    %v208 = vtanh.pop %v207
    %v209 = vadd.f32 %v208, 1.0
    %v210 = vmul.f32 %v202, %v209
    %v211 = vadd.f32 %v210, %v139
    %s212 = sld [smem:[#allocation2 + $0x15]]
    %v213 = vstv %s212
    %v214 = vmul.f32 %v139, %v213
    %s215 = sld [smem:[#allocation4 + $0x7]]
    %v216 = vstv %s215
    %v217 = vadd.f32 %v214, %v216
    %s218 = sld [smem:[#allocation2 + $0x16]]
    %v219 = vstv %s218
    %v220 = vmul.f32 %v163, %v219
    %v221 = vadd.f32 %v217, %v220
    %s222 = sld [smem:[#allocation2 + $0x17]]
    %v223 = vstv %s222
    %v224 = vmul.f32 %v187, %v223
    %v225 = vadd.f32 %v221, %v224
    %v226 = vmul.f32 %v225, 0.5
    %v227 = vmul.f32 %v225, %v225
    %v228 = vmul.f32 %v227, %v225
    %v229 = vmul.f32 %v228, 0.044715
    %v230 = vadd.f32 %v225, %v229
    %v231 = vmul.f32 %v230, 0.7978845
    %v232 = vtanh.pop %v231
    %v233 = vadd.f32 %v232, 1.0
    %v234 = vmul.f32 %v226, %v233
    %v235 = vadd.f32 %v234, %v163
    %s236 = sld [smem:[#allocation2 + $0x18]]
    %v237 = vstv %s236
    %v238 = vmul.f32 %v139, %v237
    %s239 = sld [smem:[#allocation4 + $0x8]]
    %v240 = vstv %s239
    %v241 = vadd.f32 %v238, %v240
    %s242 = sld [smem:[#allocation2 + $0x19]]
    %v243 = vstv %s242
    %v244 = vmul.f32 %v163, %v243
    %v245 = vadd.f32 %v241, %v244
    %s246 = sld [smem:[#allocation2 + $0x1a]]
    %v247 = vstv %s246
    %v248 = vmul.f32 %v187, %v247
    %v249 = vadd.f32 %v245, %v248
    %v250 = vmul.f32 %v249, 0.5
    %v251 = vmul.f32 %v249, %v249
    %v252 = vmul.f32 %v251, %v249
    %v253 = vmul.f32 %v252, 0.044715
    %v254 = vadd.f32 %v249, %v253
    %v255 = vmul.f32 %v254, 0.7978845
    %v256 = vtanh.pop %v255
    %v257 = vadd.f32 %v256, 1.0
    %v258 = vmul.f32 %v250, %v257
    %v259 = vadd.f32 %v258, %v187
    %s260 = sld [smem:[#allocation2 + $0x1b]]
    %v261 = vstv %s260
    %v262 = vmul.f32 %v211, %v261
    %s263 = sld [smem:[#allocation4 + $0x9]]
    %v264 = vstv %s263
    %v265 = vadd.f32 %v262, %v264
    %s266 = sld [smem:[#allocation2 + $0x1c]]
    %v267 = vstv %s266
    %v268 = vmul.f32 %v235, %v267
    %v269 = vadd.f32 %v265, %v268
    %s270 = sld [smem:[#allocation2 + $0x1d]]
    %v271 = vstv %s270
    %v272 = vmul.f32 %v259, %v271
    %v273 = vadd.f32 %v269, %v272
    %v274 = vmul.f32 %v273, 0.5
    %v275 = vmul.f32 %v273, %v273
    %v276 = vmul.f32 %v275, %v273
    %v277 = vmul.f32 %v276, 0.044715
    %v278 = vadd.f32 %v273, %v277
    %v279 = vmul.f32 %v278, 0.7978845
    %v280 = vtanh.pop %v279
    %v281 = vadd.f32 %v280, 1.0
    %v282 = vmul.f32 %v274, %v281
    %v283 = vadd.f32 %v282, %v211
    %s284 = sld [smem:[#allocation2 + $0x1e]]
    %v285 = vstv %s284
    %v286 = vmul.f32 %v211, %v285
    %s287 = sld [smem:[#allocation4 + $0xa]]
    %v288 = vstv %s287
    %v289 = vadd.f32 %v286, %v288
    %s290 = sld [smem:[#allocation2 + $0x1f]]
    %v291 = vstv %s290
    %v292 = vmul.f32 %v235, %v291
    %v293 = vadd.f32 %v289, %v292
    %s294 = sld [smem:[#allocation2 + $0x20]]
    %v295 = vstv %s294
    %v296 = vmul.f32 %v259, %v295
    %v297 = vadd.f32 %v293, %v296
    %v298 = vmul.f32 %v297, 0.5
    %v299 = vmul.f32 %v297, %v297
    %v300 = vmul.f32 %v299, %v297
    %v301 = vmul.f32 %v300, 0.044715
    %v302 = vadd.f32 %v297, %v301
    %v303 = vmul.f32 %v302, 0.7978845
    %v304 = vtanh.pop %v303
    %v305 = vadd.f32 %v304, 1.0
    %v306 = vmul.f32 %v298, %v305
    %v307 = vadd.f32 %v306, %v235
    %s308 = sld [smem:[#allocation2 + $0x21]]
    %v309 = vstv %s308
    %v310 = vmul.f32 %v211, %v309
    %s311 = sld [smem:[#allocation4 + $0xb]]
    %v312 = vstv %s311
    %v313 = vadd.f32 %v310, %v312
    %s314 = sld [smem:[#allocation2 + $0x22]]
    %v315 = vstv %s314
    %v316 = vmul.f32 %v235, %v315
    %v317 = vadd.f32 %v313, %v316
    %s318 = sld [smem:[#allocation2 + $0x23]]
    %v319 = vstv %s318
    %v320 = vmul.f32 %v259, %v319
    %v321 = vadd.f32 %v317, %v320
    %v322 = vmul.f32 %v321, 0.5
    %v323 = vmul.f32 %v321, %v321
    %v324 = vmul.f32 %v323, %v321
    %v325 = vmul.f32 %v324, 0.044715
    %v326 = vadd.f32 %v321, %v325
    %v327 = vmul.f32 %v326, 0.7978845
    %v328 = vtanh.pop %v327
    %v329 = vadd.f32 %v328, 1.0
    %v330 = vmul.f32 %v322, %v329
    %v331 = vadd.f32 %v330, %v259
    %s332 = sld [smem:[#allocation2 + $0x24]]
    %v333 = vstv %s332
    %v334 = vmul.f32 %v283, %v333
    %s335 = sld [smem:[#allocation4 + $0xc]]
    %v336 = vstv %s335
    %v337 = vadd.f32 %v334, %v336
    %s338 = sld [smem:[#allocation2 + $0x25]]
    %v339 = vstv %s338
    %v340 = vmul.f32 %v307, %v339
    %v341 = vadd.f32 %v337, %v340
    %s342 = sld [smem:[#allocation2 + $0x26]]
    %v343 = vstv %s342
    %v344 = vmul.f32 %v331, %v343
    %v345 = vadd.f32 %v341, %v344
    %v346 = vmul.f32 %v345, 0.5
    %v347 = vmul.f32 %v345, %v345
    %v348 = vmul.f32 %v347, %v345
    %v349 = vmul.f32 %v348, 0.044715
    %v350 = vadd.f32 %v345, %v349
    %v351 = vmul.f32 %v350, 0.7978845
    %v352 = vtanh.pop %v351
    %v353 = vadd.f32 %v352, 1.0
    %v354 = vmul.f32 %v346, %v353
    %355 = vst [vmem:[%s3] sm:$0x1] %v354
    // Predicated region
    $region22: #{dnn_forward.1} parent=1 // pred_check
      _
    $region23: #{dnn_forward.1} parent=1 // pred_check_branch
      %357 = sbr.rel (0) target = $region25
    $region24: #{dnn_forward.1} parent=1 // pred_region
      _
    $region25: #{dnn_forward.1} parent=1 // pred_fallthru
      _
    // Predicated region
    $region26: #{dnn_forward.1} parent=1 // pred_check
      _
    $region27: #{dnn_forward.1} parent=1 // pred_check_branch
      %359 = sbr.rel (0) target = $region29
    $region28: #{dnn_forward.1} parent=1 // pred_region
      _
    $region29: #{dnn_forward.1} parent=1 // pred_fallthru
      _
    %360 = vsyncpa [#allocation3], 1
    %361 = vsyncpa [#allocation5], 1

</llo_original>
